<compile_context>
chip_gen: v6e
topology: v6e:2x2x1
jax: 0.10.0
libtpu: 0.0.40
codegen_flags: <defaults>
</compile_context>

<pallas_src>
import functools

import jax
import jax.numpy as jnp
import numpy as np
from jax.experimental import pallas as pl
from jax.experimental.pallas import tpu as pltpu

EPS = 1e-5        # RevIN eps
_SIDE_H = 16      # per-channel side-table rows (multiple of 8 for sublane tiling)
# side-table rows (one value per channel lane):
# 0: aw   1: ab   2: 1/(aw+eps^2)   3: km = cm - ab*sum_wm   4: ks = cs - ab*sum_ws
# 5: sum_wm   6: sum_ws   7: mean_dec bias   8: std_dec bias   9..15: zero pad


# ----------------------------------------------------------------------------
# Pallas kernel: one grid step == (BT batches) x (CT channels), transposed math.
# x block (BT, L, CT): time on sublanes, channels on lanes.
# ----------------------------------------------------------------------------
def _rmlp_kernel(x_ref, side_ref, w1f_ref, b1_ref, w2_ref, b2_ref, out_ref):
    bt = x_ref.shape[0]
    ct = x_ref.shape[2]
    n_out = w2_ref.shape[0]          # latent_dim + 2
    d = n_out - 2
    cd = w1f_ref.dtype               # compute dtype of the fused weights

    side = side_ref[...]             # (16, CT) f32
    aw, ab, inv_aw = side[0:1], side[1:2], side[2:3]
    km, ks = side[3:4], side[4:5]
    sum_wm, sum_ws = side[5:6], side[6:7]
    bm, bs = side[7:8], side[8:9]

    # Hoisted weight loads (reused by every unrolled batch iteration).
    w1fT = w1f_ref[...]              # (H, L)   compute dtype
    b1T = b1_ref[...]                # (H, 1)   f32
    w2T = w2_ref[...]                # (N, H)   compute dtype
    b2T = b2_ref[...]                # (N, 1)   f32

    row = jax.lax.broadcasted_iota(jnp.int32, (n_out, ct), 0)

    for b in range(bt):              # static, small (<= batch_block), unrolled
        x = x_ref[b].astype(jnp.float32)                         # (L, CT)

        # --- RevIN 'norm' statistics over time (sublanes), f32 ---
        mean = jnp.mean(x, axis=0, keepdims=True)                # (1, CT)
        var = jnp.mean((x - mean) ** 2, axis=0, keepdims=True)   # unbiased=False
        ve = var + EPS
        inv_std = jax.lax.rsqrt(ve)                              # EUP, no divide
        stdev = ve * inv_std                                     # == sqrt(ve)
        xn = (x - mean) * (inv_std * aw) + ab                    # (L, CT)

        # --- rfft(ortho) + enc layer 1 (fused host-side), weight on LHS ---
        h = jnp.dot(w1fT, xn.astype(cd),
                    preferred_element_type=jnp.float32) + b1T    # (H, CT)
        h = jnp.maximum(h, 0.0)

        # --- enc layer 2 with folded mean/std projection columns ---
        g = jnp.dot(w2T, h.astype(cd),
                    preferred_element_type=jnp.float32) + b2T    # (N, CT)
        # rows 0..D-1 of g are the latents; rows D, D+1 are z_mean, z_std.

        # --- pred_dec + irfft + RevIN denorm + decoders (folded) epilogue ---
        s = stdev * inv_aw
        mp = s * (g[d:d + 1] + km) + mean * sum_wm + bm          # (1, CT)
        sp = s * (g[d + 1:d + 2] + ks) + mean * sum_ws + bs      # (1, CT)

        out = jnp.where(row == d, jnp.broadcast_to(mp, (n_out, ct)), g)
        out = jnp.where(row == d + 1, jnp.broadcast_to(sp, (n_out, ct)), out)
        out_ref[b] = out                                         # single full store


# ----------------------------------------------------------------------------
# Host-side parameter preparation: DFT matrices + full linear-chain fusion.
# All fusion is done in float64 and cast down, so it is exact algebra.
# ----------------------------------------------------------------------------
def _prepare_operands(params, seq_length, compute_dtype):
    f64 = np.float64
    aw = np.asarray(params["rev_weight"], f64)
    ab = np.asarray(params["rev_bias"], f64)
    C = aw.shape[0]
    L = int(seq_length)
    K = L // 2 + 1
    TL = int(np.asarray(params["mean_dec_w"]).shape[1])
    # torch.fft.irfft without n returns length 2*(TK-1); the module only type-
    # checks when target_seq_length is even, so require it explicitly.
    assert TL % 2 == 0, "target_seq_length must be even"
    TK = TL // 2 + 1

    # rfft (norm='ortho') as (L, K) real matrices.
    n = np.arange(L, dtype=f64)[:, None]
    k = np.arange(K, dtype=f64)[None, :]
    ang = 2.0 * np.pi * n * k / L
    Wc = np.cos(ang) / np.sqrt(L)
    Ws = -np.sin(ang) / np.sqrt(L)

    # irfft (norm='ortho') as (TK, TL) real matrices (even TL: coef 1 at DC and
    # Nyquist, 2 elsewhere; imag parts of DC/Nyquist vanish since sin == 0).
    kk = np.arange(TK, dtype=f64)[:, None]
    t = np.arange(TL, dtype=f64)[None, :]
    ang2 = 2.0 * np.pi * kk * t / TL
    coef = np.where((np.arange(TK) == 0) | (np.arange(TK) == TL // 2), 1.0, 2.0)[:, None]
    Mr = coef * np.cos(ang2) / np.sqrt(TL)
    Mi = -coef * np.sin(ang2) / np.sqrt(TL)

    w1 = np.asarray(params["enc_w1"], f64)        # (H, 2K)
    b1 = np.asarray(params["enc_b1"], f64)        # (H,)
    w2 = np.asarray(params["enc_w2"], f64)        # (D, H)
    b2 = np.asarray(params["enc_b2"], f64)        # (D,)
    wp = np.asarray(params["pred_dec_w"], f64)    # (2TK, D)
    bp = np.asarray(params["pred_dec_b"], f64)    # (2TK,)
    wm = np.asarray(params["mean_dec_w"], f64)[0]     # (TL,)
    bm = float(np.asarray(params["mean_dec_b"], f64)[0])
    wsd = np.asarray(params["std_dec_w"], f64)[0]
    bsd = float(np.asarray(params["std_dec_b"], f64)[0])

    # rfft + layer-1 fusion: (L, H)
    w1t = w1.T
    W1f = Wc @ w1t[:K] + Ws @ w1t[K:]

    # pred_dec + irfft fusion: (D, TL), then project through mean/std decoders.
    wpt = wp.T                                    # (D, 2TK)
    Wpf = wpt[:, :TK] @ Mr + wpt[:, TK:] @ Mi     # (D, TL)
    bpf = bp[:TK] @ Mr + bp[TK:] @ Mi             # (TL,)

    vm = Wpf @ wm                                 # (D,)
    vs = Wpf @ wsd
    cm = float(bpf @ wm)
    cs = float(bpf @ wsd)
    sum_wm = float(wm.sum())
    sum_ws = float(wsd.sum())

    # Fold the (D, 2) mean/std projection into the second encoder layer:
    # g = [latents | lat@vm | lat@vs]   (exact algebra).
    vmat = np.stack([vm, vs], axis=1)             # (D, 2)
    w2t = w2.T                                    # (H, D)
    w2aug = np.concatenate([w2t, w2t @ vmat], axis=1)   # (H, D+2)
    b2aug = np.concatenate([b2, b2 @ vmat])             # (D+2,)

    side = np.zeros((_SIDE_H, C), np.float32)
    side[0] = aw
    side[1] = ab
    side[2] = 1.0 / (aw + EPS * EPS)
    side[3] = cm - ab * sum_wm
    side[4] = cs - ab * sum_ws
    side[5] = sum_wm
    side[6] = sum_ws
    side[7] = bm
    side[8] = bsd

    return dict(
        side=jnp.asarray(side),
        w1fT=jnp.asarray(W1f.T.astype(np.float32)).astype(compute_dtype),     # (H, L)
        b1T=jnp.asarray(b1.astype(np.float32)).reshape(-1, 1),                # (H, 1)
        w2augT=jnp.asarray(w2aug.T.astype(np.float32)).astype(compute_dtype), # (D+2, H)
        b2T=jnp.asarray(b2aug.astype(np.float32)).reshape(-1, 1),             # (D+2, 1)
    )


def _choose_tiles(B, C, L, x_itemsize, batch_block, channel_block):
    """Pick (batch_tile, channel_tile).

    channel_tile is either all of C or a multiple of 128 (lane tiling rule).
    batch_tile keeps the double-buffered input tile around <= 8 MiB per buffer
    and guarantees >= 2 grid steps when possible (v7x has 2 TensorCores).
    """
    if C <= channel_block:
        ct = C
    else:
        ct = max(128, (channel_block // 128) * 128)
    per_buffer_budget = 8 << 20
    max_bt = max(1, per_buffer_budget // max(1, L * ct * x_itemsize))
    bt = int(max(1, min(batch_block, max_bt, B)))
    if pl.cdiv(B, bt) * pl.cdiv(C, ct) < 2 and B > 1:
        bt = int(pl.cdiv(B, 2))
    return bt, ct


# ----------------------------------------------------------------------------
# Jitted device-side forward: pallas_call on the native (B, L, C) layout.
# ----------------------------------------------------------------------------
@functools.partial(jax.jit, static_argnames=("batch_block", "channel_block"))
def _forward_impl(observed, side, w1fT, b1T, w2augT, b2T, *, batch_block, channel_block):
    B, L, C = observed.shape
    H = w1fT.shape[0]
    N = w2augT.shape[0]          # latent_dim + 2
    D = N - 2

    BT, CT = _choose_tiles(B, C, L, observed.dtype.itemsize, batch_block, channel_block)
    grid = (pl.cdiv(B, BT), pl.cdiv(C, CT))

    weight_bytes = sum(int(np.prod(a.shape)) * a.dtype.itemsize
                       for a in (side, w1fT, b1T, w2augT, b2T))
    vmem_need = (2 * BT * L * CT * observed.dtype.itemsize   # input (double buffered)
                 + 2 * BT * N * CT * 4                       # output (double buffered)
                 + 2 * weight_bytes                          # weights (double buffered)
                 + (4 << 20))                                # headroom
    vmem_limit = int(min(64 << 20, max(vmem_need, 16 << 20)))  # v7x-safe cap

    cost = pl.CostEstimate(
        flops=int(2 * B * C * (L * H + H * N)),
        transcendentals=int(B * C),
        bytes_accessed=int(B * L * C * observed.dtype.itemsize
                           + B * N * C * 4 + weight_bytes),
    )

    out = pl.pallas_call(
        _rmlp_kernel,
        out_shape=jax.ShapeDtypeStruct((B, N, C), jnp.float32),
        grid_spec=pltpu.PrefetchScalarGridSpec(
            num_scalar_prefetch=0,
            grid=grid,
            in_specs=[
                pl.BlockSpec((BT, L, CT), lambda i, j: (i, 0, j)),
                pl.BlockSpec((_SIDE_H, CT), lambda i, j: (0, j)),
                pl.BlockSpec(w1fT.shape, lambda i, j: (0, 0)),
                pl.BlockSpec(b1T.shape, lambda i, j: (0, 0)),
                pl.BlockSpec(w2augT.shape, lambda i, j: (0, 0)),
                pl.BlockSpec(b2T.shape, lambda i, j: (0, 0)),
            ],
            out_specs=pl.BlockSpec((BT, N, CT), lambda i, j: (i, 0, j)),
        ),
        compiler_params=pltpu.CompilerParams(
            dimension_semantics=("parallel", "parallel"),
            vmem_limit_bytes=vmem_limit,
        ),
        cost_estimate=cost,
    )(observed, side, w1fT, b1T, w2augT, b2T)

    latents = jnp.swapaxes(out[:, :D, :], 1, 2)     # (B, C, D) -- small transpose
    mean_pred = out[:, D:D + 1, :]                  # (B, 1, C) -- native layout
    std_pred = out[:, D + 1:D + 2, :]               # (B, 1, C)
    return {"latents": latents, "mean_pred": mean_pred, "std_pred": std_pred}


def rmlp_stats_conditioner_forward(observed_data, params, *,
                                   compute_dtype=jnp.float32,
                                   batch_block=8, channel_block=1024):
    """observed_data: (B, seq_length, seq_channels) float32 or bfloat16.

    compute_dtype=jnp.bfloat16 casts the fused matmul weights/operands to bf16
    (full-rate MXU on v5e/v6e/v7x) with f32 accumulation; RevIN statistics and
    the epilogue stay f32.  bfloat16 inputs are DMA'd as bf16 and upcast
    in-kernel.
    """
    ops = _prepare_operands(params, observed_data.shape[1], compute_dtype)
    x = observed_data
    if x.dtype not in (np.dtype(np.float32), np.dtype(jnp.bfloat16)):
        x = x.astype(jnp.float32)
    return _forward_impl(x, ops["side"], ops["w1fT"], ops["b1T"],
                         ops["w2augT"], ops["b2T"],
                         batch_block=batch_block, channel_block=channel_block)


# ----------------------------------------------------------------------------
# Deterministic parameter init (mirrors the module's __init__ shapes).
# ----------------------------------------------------------------------------
def init_params(key, seq_channels, seq_length, hidden_size, latent_dim, target_seq_length):
    K = seq_length // 2 + 1
    TK = target_seq_length // 2 + 1
    ks = jax.random.split(key, 8)

    def linear(k, out_f, in_f):
        kw, kb = jax.random.split(k)
        bound = 1.0 / np.sqrt(in_f)
        w = jax.random.uniform(kw, (out_f, in_f), jnp.float32, -bound, bound)
        b = jax.random.uniform(kb, (out_f,), jnp.float32, -bound, bound)
        return w, b

    enc_w1, enc_b1 = linear(ks[0], hidden_size, 2 * K)
    enc_w2, enc_b2 = linear(ks[1], latent_dim, hidden_size)
    pred_w, pred_b = linear(ks[2], 2 * TK, latent_dim)
    mean_w, mean_b = linear(ks[3], 1, target_seq_length)
    std_w, std_b = linear(ks[4], 1, target_seq_length)

    return {
        "rev_weight": jnp.ones((seq_channels,), jnp.float32),   # RevIN affine init
        "rev_bias": jnp.zeros((seq_channels,), jnp.float32),
        "enc_w1": enc_w1, "enc_b1": enc_b1,
        "enc_w2": enc_w2, "enc_b2": enc_b2,
        "pred_dec_w": pred_w, "pred_dec_b": pred_b,
        "mean_dec_w": mean_w, "mean_dec_b": mean_b,
        "std_dec_w": std_w, "std_dec_b": std_b,
    }


# ----------------------------------------------------------------------------
# Pure-JAX reference (uses jnp.fft) for correctness checking.
# ----------------------------------------------------------------------------
def ref_forward(x, params):
    aw, ab = params["rev_weight"], params["rev_bias"]
    mean = jnp.mean(x, axis=1, keepdims=True)
    var = jnp.mean((x - mean) ** 2, axis=1, keepdims=True)
    std = jnp.sqrt(var + EPS)
    xn = (x - mean) / std * aw + ab
    X = jnp.fft.rfft(xn, axis=1, norm="ortho")
    xcat = jnp.concatenate([X.real, X.imag], axis=1)            # (B, 2K, C)
    xp = jnp.transpose(xcat, (0, 2, 1))                         # (B, C, 2K)
    h = jax.nn.relu(xp @ params["enc_w1"].T + params["enc_b1"])
    lat = h @ params["enc_w2"].T + params["enc_b2"]             # (B, C, D)
    y = lat @ params["pred_dec_w"].T + params["pred_dec_b"]     # (B, C, 2TK)
    yp = jnp.transpose(y, (0, 2, 1))
    TK = params["pred_dec_w"].shape[0] // 2
    TL = params["mean_dec_w"].shape[1]
    yc = yp[:, :TK, :] + 1j * yp[:, TK:, :]
    yt = jnp.fft.irfft(yc, n=TL, axis=1, norm="ortho")          # (B, TL, C)
    yd = (yt - ab) / (aw + EPS * EPS) * std + mean
    ydp = jnp.transpose(yd, (0, 2, 1))
    mp = jnp.transpose(ydp @ params["mean_dec_w"].T + params["mean_dec_b"], (0, 2, 1))
    sp = jnp.transpose(ydp @ params["std_dec_w"].T + params["std_dec_b"], (0, 2, 1))
    return {"latents": lat, "mean_pred": mp, "std_pred": sp}


if __name__ == "__main__":
    def run_case(key, B, C, L, H, D, TL, compute_dtype, rtol, atol,
                 input_dtype=jnp.float32, batch_block=8):
        kx, kp = jax.random.split(key)
        observed = jax.random.normal(kx, (B, L, C), jnp.float32)
        if input_dtype != jnp.float32:
            observed = observed.astype(input_dtype)
        params = init_params(kp, C, L, H, D, TL)
        out = rmlp_stats_conditioner_forward(observed, params,
                                             compute_dtype=compute_dtype,
                                             batch_block=batch_block)
        out = jax.tree_util.tree_map(jax.block_until_ready, out)
        assert out["latents"].shape == (B, C, D)
        assert out["mean_pred"].shape == (B, 1, C)
        assert out["std_pred"].shape == (B, 1, C)
        ref = ref_forward(observed.astype(jnp.float32), params)
        for name in ("latents", "mean_pred", "std_pred"):
            np.testing.assert_allclose(np.asarray(out[name]), np.asarray(ref[name]),
                                       rtol=rtol, atol=atol)

    key = jax.random.PRNGKey(0)
    k1, k2, k3, k4 = jax.random.split(key, 4)

    # f32 path at the module's nominal small shapes -- tight tolerance.
    run_case(k1, B=2, C=4, L=16, H=32, D=8, TL=16,
             compute_dtype=jnp.float32, rtol=1e-4, atol=1e-4)

    # Different dims + partial batch block (B=3 -> BT=2 -> grid (2,1), the last
    # block has one out-of-bounds batch discarded by Pallas).
    run_case(k2, B=3, C=5, L=24, H=48, D=16, TL=12,
             compute_dtype=jnp.float32, rtol=1e-4, atol=1e-4)

    # bf16 weight path (full-rate MXU on all generations) -- looser tolerance.
    run_case(k3, B=2, C=4, L=16, H=32, D=8, TL=16,
             compute_dtype=jnp.bfloat16, rtol=2e-2, atol=2e-2)

    # bf16 input kept bf16 through the DMA, upcast in-kernel; f32 compute.
    run_case(k4, B=2, C=4, L=16, H=32, D=8, TL=16,
             compute_dtype=jnp.float32, rtol=1e-3, atol=1e-3,
             input_dtype=jnp.bfloat16)

    print("KERNEL_OK")
</pallas_src>

<mosaic_0001>
module attributes {stable_mosaic.version = 11 : i64} {
  func.func @_rmlp_kernel(%arg0: i32, %arg1: i32, %arg2: memref<1x16x4xf32, #tpu.memory_space<vmem>>, %arg3: memref<16x4xf32, #tpu.memory_space<vmem>>, %arg4: memref<32x16xf32, #tpu.memory_space<vmem>>, %arg5: memref<32x1xf32, #tpu.memory_space<vmem>>, %arg6: memref<10x32xf32, #tpu.memory_space<vmem>>, %arg7: memref<10x1xf32, #tpu.memory_space<vmem>>, %arg8: memref<1x10x4xf32, #tpu.memory_space<vmem>>) attributes {dimension_semantics = [#tpu.dimension_semantics<parallel>, #tpu.dimension_semantics<parallel>], iteration_bounds = array<i64: 2, 1>, scalar_prefetch = 0 : i64, scratch_operands = 0 : i64, tpu.core_type = #tpu.core_type<tc>, window_params = [{transform_indices = @transform_0, window_bounds = array<i64: 1, 16, 4>}, {transform_indices = @transform_1, window_bounds = array<i64: 16, 4>}, {pipeline_mode = #tpu.pipeline_mode<synchronous>, transform_indices = @transform_2, window_bounds = array<i64: 32, 16>}, {pipeline_mode = #tpu.pipeline_mode<synchronous>, transform_indices = @transform_3, window_bounds = array<i64: 32, 1>}, {pipeline_mode = #tpu.pipeline_mode<synchronous>, transform_indices = @transform_4, window_bounds = array<i64: 10, 32>}, {pipeline_mode = #tpu.pipeline_mode<synchronous>, transform_indices = @transform_5, window_bounds = array<i64: 10, 1>}, {transform_indices = @transform_6, window_bounds = array<i64: 1, 10, 4>}]} {
    %c0 = arith.constant 0 : index
    %c0_0 = arith.constant 0 : index
    %0 = vector.load %arg3[%c0, %c0_0] : memref<16x4xf32, #tpu.memory_space<vmem>>, vector<16x4xf32>
    %1 = vector.extract_strided_slice %0 {offsets = [0, 0], sizes = [1, 4], strides = [1, 1]} : vector<16x4xf32> to vector<1x4xf32>
    %2 = vector.extract_strided_slice %0 {offsets = [1, 0], sizes = [1, 4], strides = [1, 1]} : vector<16x4xf32> to vector<1x4xf32>
    %3 = vector.extract_strided_slice %0 {offsets = [2, 0], sizes = [1, 4], strides = [1, 1]} : vector<16x4xf32> to vector<1x4xf32>
    %4 = vector.extract_strided_slice %0 {offsets = [3, 0], sizes = [1, 4], strides = [1, 1]} : vector<16x4xf32> to vector<1x4xf32>
    %5 = vector.extract_strided_slice %0 {offsets = [4, 0], sizes = [1, 4], strides = [1, 1]} : vector<16x4xf32> to vector<1x4xf32>
    %6 = vector.extract_strided_slice %0 {offsets = [5, 0], sizes = [1, 4], strides = [1, 1]} : vector<16x4xf32> to vector<1x4xf32>
    %7 = vector.extract_strided_slice %0 {offsets = [6, 0], sizes = [1, 4], strides = [1, 1]} : vector<16x4xf32> to vector<1x4xf32>
    %8 = vector.extract_strided_slice %0 {offsets = [7, 0], sizes = [1, 4], strides = [1, 1]} : vector<16x4xf32> to vector<1x4xf32>
    %9 = vector.extract_strided_slice %0 {offsets = [8, 0], sizes = [1, 4], strides = [1, 1]} : vector<16x4xf32> to vector<1x4xf32>
    %c0_1 = arith.constant 0 : index
    %c0_2 = arith.constant 0 : index
    %10 = vector.load %arg4[%c0_1, %c0_2] : memref<32x16xf32, #tpu.memory_space<vmem>>, vector<32x16xf32>
    %c0_3 = arith.constant 0 : index
    %c0_4 = arith.constant 0 : index
    %11 = vector.load %arg5[%c0_3, %c0_4] : memref<32x1xf32, #tpu.memory_space<vmem>>, vector<32x1xf32>
    %c0_5 = arith.constant 0 : index
    %c0_6 = arith.constant 0 : index
    %12 = vector.load %arg6[%c0_5, %c0_6] : memref<10x32xf32, #tpu.memory_space<vmem>>, vector<10x32xf32>
    %c0_7 = arith.constant 0 : index
    %c0_8 = arith.constant 0 : index
    %13 = vector.load %arg7[%c0_7, %c0_8] : memref<10x1xf32, #tpu.memory_space<vmem>>, vector<10x1xf32>
    %14 = tpu.iota {dimensions = array<i32: 0>} : vector<10x4xi32>
    %c0_9 = arith.constant 0 : index
    %c0_10 = arith.constant 0 : index
    %c0_11 = arith.constant 0 : index
    %15 = vector.load %arg2[%c0_9, %c0_10, %c0_11] : memref<1x16x4xf32, #tpu.memory_space<vmem>>, vector<1x16x4xf32>
    %16 = vector.shape_cast %15 : vector<1x16x4xf32> to vector<16x4xf32>
    %cst = arith.constant dense<0.000000e+00> : vector<4xf32>
    %17 = vector.multi_reduction <add>, %16, %cst [0] : vector<16x4xf32> to vector<4xf32>
    %18 = vector.shape_cast %17 : vector<4xf32> to vector<1x4xf32>
    %cst_12 = arith.constant 1.600000e+01 : f32
    %19 = vector.broadcast %cst_12 : f32 to vector<1x4xf32>
    %20 = arith.divf %18, %19 : vector<1x4xf32>
    %21 = vector.broadcast %20 : vector<1x4xf32> to vector<16x4xf32>
    %22 = arith.subf %16, %21 : vector<16x4xf32>
    %23 = arith.mulf %22, %22 : vector<16x4xf32>
    %cst_13 = arith.constant dense<0.000000e+00> : vector<4xf32>
    %24 = vector.multi_reduction <add>, %23, %cst_13 [0] : vector<16x4xf32> to vector<4xf32>
    %25 = vector.shape_cast %24 : vector<4xf32> to vector<1x4xf32>
    %cst_14 = arith.constant 1.600000e+01 : f32
    %26 = vector.broadcast %cst_14 : f32 to vector<1x4xf32>
    %27 = arith.divf %25, %26 : vector<1x4xf32>
    %cst_15 = arith.constant 9.99999974E-6 : f32
    %28 = vector.broadcast %cst_15 : f32 to vector<1x4xf32>
    %29 = arith.addf %27, %28 : vector<1x4xf32>
    %30 = math.rsqrt %29 : vector<1x4xf32>
    %31 = arith.mulf %29, %30 : vector<1x4xf32>
    %32 = vector.broadcast %20 : vector<1x4xf32> to vector<16x4xf32>
    %33 = arith.subf %16, %32 : vector<16x4xf32>
    %34 = arith.mulf %30, %1 : vector<1x4xf32>
    %35 = vector.broadcast %34 : vector<1x4xf32> to vector<16x4xf32>
    %36 = arith.mulf %33, %35 : vector<16x4xf32>
    %37 = vector.broadcast %2 : vector<1x4xf32> to vector<16x4xf32>
    %38 = arith.addf %36, %37 : vector<16x4xf32>
    %cst_16 = arith.constant dense<0.000000e+00> : vector<32x4xf32>
    %39 = tpu.matmul %10, %38, %cst_16 {dimension_numbers = #tpu.dot_dimension_numbers<[1], [0], [0], [1], [0, 0, 1, 1], [], []>} : vector<32x16xf32>, vector<16x4xf32>, vector<32x4xf32> -> vector<32x4xf32>
    %40 = vector.broadcast %11 : vector<32x1xf32> to vector<32x4xf32>
    %41 = arith.addf %39, %40 : vector<32x4xf32>
    %cst_17 = arith.constant 0.000000e+00 : f32
    %42 = vector.broadcast %cst_17 : f32 to vector<32x4xf32>
    %43 = arith.maximumf %41, %42 : vector<32x4xf32>
    %cst_18 = arith.constant dense<0.000000e+00> : vector<10x4xf32>
    %44 = tpu.matmul %12, %43, %cst_18 {dimension_numbers = #tpu.dot_dimension_numbers<[1], [0], [0], [1], [0, 0, 1, 1], [], []>} : vector<10x32xf32>, vector<32x4xf32>, vector<10x4xf32> -> vector<10x4xf32>
    %45 = vector.broadcast %13 : vector<10x1xf32> to vector<10x4xf32>
    %46 = arith.addf %44, %45 : vector<10x4xf32>
    %47 = arith.mulf %31, %3 : vector<1x4xf32>
    %48 = vector.extract_strided_slice %46 {offsets = [8, 0], sizes = [1, 4], strides = [1, 1]} : vector<10x4xf32> to vector<1x4xf32>
    %49 = arith.addf %48, %4 : vector<1x4xf32>
    %50 = arith.mulf %47, %49 : vector<1x4xf32>
    %51 = arith.mulf %20, %6 : vector<1x4xf32>
    %52 = arith.addf %50, %51 : vector<1x4xf32>
    %53 = arith.addf %52, %8 : vector<1x4xf32>
    %54 = vector.extract_strided_slice %46 {offsets = [9, 0], sizes = [1, 4], strides = [1, 1]} : vector<10x4xf32> to vector<1x4xf32>
    %55 = arith.addf %54, %5 : vector<1x4xf32>
    %56 = arith.mulf %47, %55 : vector<1x4xf32>
    %57 = arith.mulf %20, %7 : vector<1x4xf32>
    %58 = arith.addf %56, %57 : vector<1x4xf32>
    %59 = arith.addf %58, %9 : vector<1x4xf32>
    %c8_i32 = arith.constant 8 : i32
    %60 = vector.broadcast %c8_i32 : i32 to vector<10x4xi32>
    %61 = arith.cmpi eq, %14, %60 : vector<10x4xi32>
    %62 = vector.shape_cast %53 : vector<1x4xf32> to vector<1x4xf32>
    %63 = vector.broadcast %62 : vector<1x4xf32> to vector<10x4xf32>
    %64 = arith.select %61, %63, %46 : vector<10x4xi1>, vector<10x4xf32>
    %c9_i32 = arith.constant 9 : i32
    %65 = vector.broadcast %c9_i32 : i32 to vector<10x4xi32>
    %66 = arith.cmpi eq, %14, %65 : vector<10x4xi32>
    %67 = vector.shape_cast %59 : vector<1x4xf32> to vector<1x4xf32>
    %68 = vector.broadcast %67 : vector<1x4xf32> to vector<10x4xf32>
    %69 = arith.select %66, %68, %64 : vector<10x4xi1>, vector<10x4xf32>
    %c0_19 = arith.constant 0 : index
    %c0_20 = arith.constant 0 : index
    %c0_21 = arith.constant 0 : index
    %70 = vector.load %arg8[%c0_19, %c0_20, %c0_21] : memref<1x10x4xf32, #tpu.memory_space<vmem>>, vector<1x10x4xf32>
    %71 = vector.shape_cast %70 : vector<1x10x4xf32> to vector<10x4xf32>
    %72 = vector.shape_cast %69 : vector<10x4xf32> to vector<1x10x4xf32>
    tpu.vector_store %arg8[%c0_19, %c0_20, %c0_21], %72 {strides = array<i32>} : memref<1x10x4xf32, #tpu.memory_space<vmem>>, vector<1x10x4xf32>,
    return
  }
  func.func @transform_0(%arg0: i32, %arg1: i32) -> (i32, i32, i32) {
    %c0_i32 = arith.constant 0 : i32
    %c0_i32_0 = arith.constant 0 : i32
    return %arg0, %c0_i32, %arg1 : i32, i32, i32
  }
  func.func @transform_1(%arg0: i32, %arg1: i32) -> (i32, i32) {
    %c0_i32 = arith.constant 0 : i32
    %c0_i32_0 = arith.constant 0 : i32
    return %c0_i32, %arg1 : i32, i32
  }
  func.func @transform_2(%arg0: i32, %arg1: i32) -> (i32, i32) {
    %c0_i32 = arith.constant 0 : i32
    %c0_i32_0 = arith.constant 0 : i32
    %c0_i32_1 = arith.constant 0 : i32
    return %c0_i32, %c0_i32_0 : i32, i32
  }
  func.func @transform_3(%arg0: i32, %arg1: i32) -> (i32, i32) {
    %c0_i32 = arith.constant 0 : i32
    %c0_i32_0 = arith.constant 0 : i32
    %c0_i32_1 = arith.constant 0 : i32
    return %c0_i32, %c0_i32_0 : i32, i32
  }
  func.func @transform_4(%arg0: i32, %arg1: i32) -> (i32, i32) {
    %c0_i32 = arith.constant 0 : i32
    %c0_i32_0 = arith.constant 0 : i32
    %c0_i32_1 = arith.constant 0 : i32
    return %c0_i32, %c0_i32_0 : i32, i32
  }
  func.func @transform_5(%arg0: i32, %arg1: i32) -> (i32, i32) {
    %c0_i32 = arith.constant 0 : i32
    %c0_i32_0 = arith.constant 0 : i32
    %c0_i32_1 = arith.constant 0 : i32
    return %c0_i32, %c0_i32_0 : i32, i32
  }
  func.func @transform_6(%arg0: i32, %arg1: i32) -> (i32, i32, i32) {
    %c0_i32 = arith.constant 0 : i32
    %c0_i32_0 = arith.constant 0 : i32
    return %arg0, %c0_i32, %arg1 : i32, i32, i32
  }
}

</mosaic_0001>

<llo_original>
// kernel: _forward_impl.1
$region0: #{_forward_impl.1}
  #allocation0 [shape = 'u32[]', space=smem, size = 0x4, offset = 0x4, fixed_abs, tag = 'smem constant byte address 0x4 - core index']
  #allocation1 [shape = 'u32[144,128]{1,0:T(1,128)}', space=vmem, size = 0x12000, scoped, tag = 'internal scratch']
  %s0 = inlined_call_operand.vmem [shape: f32[2,16,4], index: 0, kind: input, shape index: {}]
  %s1 = inlined_call_operand.vmem [shape: f32[16,4], index: 1, kind: input, shape index: {}]
  %s2 = inlined_call_operand.vmem [shape: f32[32,16], index: 2, kind: input, shape index: {}]
  %s3 = inlined_call_operand.vmem [shape: f32[32,1], index: 3, kind: input, shape index: {}]
  %s4 = inlined_call_operand.vmem [shape: f32[10,32], index: 4, kind: input, shape index: {}]
  %s5 = inlined_call_operand.vmem [shape: f32[10,1], index: 5, kind: input, shape index: {}]
  %s6 = inlined_call_operand.vmem [shape: f32[2,10,4], index: 6, kind: output, shape index: {}]
  %s7 = sld [smem:[#allocation0]]
  $region57: #{_forward_impl.1} parent=0
    _
  %s9 = ssub.s32 1, %s7
  %s10 = scalar_select 0, %s9, %s7
  loop: start=0, step=1, limit=4
  $region2: #{_forward_impl.1} parent=0 // loop_pre_header
    _
  $region3: #{_forward_impl.1} parent=0 // loop_header
    %s12 = sphi 0, %s16
    %p13 = scmp.ge.s32.totalorder %s12, 4
    %s19 = sphi 0, %s31
    %s20 = sphi 0, %s27
    %s21 = sphi 0, %s19
    %s22 = sphi 0, %s20
    %s23 = sphi 0, %s21
    %s24 = sphi 0, %s22
    %s36 = sphi 0, %s38
    %s39 = sphi 0, %s36
    %s40 = sphi 0, %s39
    %s56 = sphi 0, %s40
    %s62 = sphi 0, %s64
    %s65 = sphi 0, %s62
    %s66 = sphi 0, %s65
    %s82 = sphi 0, %s66
    %s86 = sphi 0, %s86
    %s88 = sphi 0, %s86
    %s89 = sphi 0, %s88
    %s103 = sphi 0, %s89
    %s107 = sphi 0, %s107
    %s109 = sphi 0, %s107
    %s110 = sphi 0, %s109
    %s124 = sphi 0, %s110
    %s128 = sphi 0, %s128
    %s130 = sphi 0, %s128
    %s131 = sphi 0, %s130
    %s145 = sphi 0, %s131
    %s149 = sphi 0, %s149
    %s151 = sphi 0, %s149
    %s152 = sphi 0, %s151
    %s166 = sphi 0, %s152
    %s174 = sphi 0, %s176
    %s177 = sphi 0, %s174
    %s178 = sphi 0, %s177
    %s194 = sphi 0, %s178
  $region4: #{_forward_impl.1} parent=0 // loop_header_branch
    %15 = sbr.rel (%p13) target = $region8
  $region5: #{_forward_impl.1} parent=0 // loop_body
    %s17 = ssub.s32 %s12, 1
    %s18 = ssub.s32 %s12, 2
    %s25 = sadd.s32 1, %s20
    %p26 = scmp.ge.s32.totalorder %s25, 1
    %s27 = scalar_select %p26, 0, %s25
    %s28 = sadd.s32 1, %s19
    %s29 = scalar_select %p26, %s28, %s19
    %p30 = scmp.ge.s32.totalorder %s29, 2
    %s31 = scalar_select %p30, 0, %s29
    %s32 = ssub.s32 %s19, %s31
    %s33 = ssub.s32 %s20, %s27
    %s34 = sor.u32 %s32, %s33
    %p35 = scmp.eq.s32.totalorder %s34, 0
    %s37 = sadd.s32 %s36, 1
    %s38 = scalar_select %p35, %s36, %s37
    %p41 = pneg %p35
    %p42 = scmp.eq.s32.totalorder %s12, 1
    %p43 = por %p41, %p42
    %p44 = scmp.ne.s32.totalorder %s36, %s39
    %p45 = scmp.eq.s32.totalorder %s12, 0
    %p46 = por %p44, %p45
    %p47 = scmp.ne.s32.totalorder %s36, %s39
    %p48 = scmp.eq.s32.totalorder %s17, 1
    %p49 = por %p47, %p48
    %p50 = scmp.ne.s32.totalorder %s39, %s40
    %p51 = scmp.eq.s32.totalorder %s17, 0
    %p52 = por %p50, %p51
    %p53 = scmp.ne.s32.totalorder %s39, %s40
    %p54 = scmp.eq.s32.totalorder %s18, 1
    %p55 = por %p53, %p54
    %p57 = scmp.ne.s32.totalorder %s40, %s56
    %p58 = scmp.eq.s32.totalorder %s18, 0
    %p59 = por %p57, %p58
    %s60 = ssub.s32 %s20, %s27
    %p61 = scmp.eq.s32.totalorder %s60, 0
    %s63 = sadd.s32 %s62, 1
    %s64 = scalar_select %p61, %s62, %s63
    %p67 = pneg %p61
    %p68 = scmp.eq.s32.totalorder %s12, 1
    %p69 = por %p67, %p68
    %p70 = scmp.ne.s32.totalorder %s62, %s65
    %p71 = scmp.eq.s32.totalorder %s12, 0
    %p72 = por %p70, %p71
    %p73 = scmp.ne.s32.totalorder %s62, %s65
    %p74 = scmp.eq.s32.totalorder %s17, 1
    %p75 = por %p73, %p74
    %p76 = scmp.ne.s32.totalorder %s65, %s66
    %p77 = scmp.eq.s32.totalorder %s17, 0
    %p78 = por %p76, %p77
    %p79 = scmp.ne.s32.totalorder %s65, %s66
    %p80 = scmp.eq.s32.totalorder %s18, 1
    %p81 = por %p79, %p80
    %p83 = scmp.ne.s32.totalorder %s66, %s82
    %p84 = scmp.eq.s32.totalorder %s18, 0
    %p85 = por %p83, %p84
    %s87 = sadd.s32 %s86, 1
    %p90 = scmp.eq.s32.totalorder %s12, 1
    %p91 = scmp.ne.s32.totalorder %s86, %s88
    %p92 = scmp.eq.s32.totalorder %s12, 0
    %p93 = por %p91, %p92
    %p94 = scmp.ne.s32.totalorder %s86, %s88
    %p95 = scmp.eq.s32.totalorder %s17, 1
    %p96 = por %p94, %p95
    %p97 = scmp.ne.s32.totalorder %s88, %s89
    %p98 = scmp.eq.s32.totalorder %s17, 0
    %p99 = por %p97, %p98
    %p100 = scmp.ne.s32.totalorder %s88, %s89
    %p101 = scmp.eq.s32.totalorder %s18, 1
    %p102 = por %p100, %p101
    %p104 = scmp.ne.s32.totalorder %s89, %s103
    %p105 = scmp.eq.s32.totalorder %s18, 0
    %p106 = por %p104, %p105
    %s108 = sadd.s32 %s107, 1
    %p111 = scmp.eq.s32.totalorder %s12, 1
    %p112 = scmp.ne.s32.totalorder %s107, %s109
    %p113 = scmp.eq.s32.totalorder %s12, 0
    %p114 = por %p112, %p113
    %p115 = scmp.ne.s32.totalorder %s107, %s109
    %p116 = scmp.eq.s32.totalorder %s17, 1
    %p117 = por %p115, %p116
    %p118 = scmp.ne.s32.totalorder %s109, %s110
    %p119 = scmp.eq.s32.totalorder %s17, 0
    %p120 = por %p118, %p119
    %p121 = scmp.ne.s32.totalorder %s109, %s110
    %p122 = scmp.eq.s32.totalorder %s18, 1
    %p123 = por %p121, %p122
    %p125 = scmp.ne.s32.totalorder %s110, %s124
    %p126 = scmp.eq.s32.totalorder %s18, 0
    %p127 = por %p125, %p126
    %s129 = sadd.s32 %s128, 1
    %p132 = scmp.eq.s32.totalorder %s12, 1
    %p133 = scmp.ne.s32.totalorder %s128, %s130
    %p134 = scmp.eq.s32.totalorder %s12, 0
    %p135 = por %p133, %p134
    %p136 = scmp.ne.s32.totalorder %s128, %s130
    %p137 = scmp.eq.s32.totalorder %s17, 1
    %p138 = por %p136, %p137
    %p139 = scmp.ne.s32.totalorder %s130, %s131
    %p140 = scmp.eq.s32.totalorder %s17, 0
    %p141 = por %p139, %p140
    %p142 = scmp.ne.s32.totalorder %s130, %s131
    %p143 = scmp.eq.s32.totalorder %s18, 1
    %p144 = por %p142, %p143
    %p146 = scmp.ne.s32.totalorder %s131, %s145
    %p147 = scmp.eq.s32.totalorder %s18, 0
    %p148 = por %p146, %p147
    %s150 = sadd.s32 %s149, 1
    %p153 = scmp.eq.s32.totalorder %s12, 1
    %p154 = scmp.ne.s32.totalorder %s149, %s151
    %p155 = scmp.eq.s32.totalorder %s12, 0
    %p156 = por %p154, %p155
    %p157 = scmp.ne.s32.totalorder %s149, %s151
    %p158 = scmp.eq.s32.totalorder %s17, 1
    %p159 = por %p157, %p158
    %p160 = scmp.ne.s32.totalorder %s151, %s152
    %p161 = scmp.eq.s32.totalorder %s17, 0
    %p162 = por %p160, %p161
    %p163 = scmp.ne.s32.totalorder %s151, %s152
    %p164 = scmp.eq.s32.totalorder %s18, 1
    %p165 = por %p163, %p164
    %p167 = scmp.ne.s32.totalorder %s152, %s166
    %p168 = scmp.eq.s32.totalorder %s18, 0
    %p169 = por %p167, %p168
    %s170 = ssub.s32 %s19, %s31
    %s171 = ssub.s32 %s20, %s27
    %s172 = sor.u32 %s170, %s171
    %p173 = scmp.eq.s32.totalorder %s172, 0
    %s175 = sadd.s32 %s174, 1
    %s176 = scalar_select %p173, %s174, %s175
    %p179 = pneg %p173
    %p180 = scmp.eq.s32.totalorder %s12, 1
    %p181 = por %p179, %p180
    %p182 = scmp.ne.s32.totalorder %s174, %s177
    %p183 = scmp.eq.s32.totalorder %s12, 0
    %p184 = por %p182, %p183
    %p185 = scmp.ne.s32.totalorder %s174, %s177
    %p186 = scmp.eq.s32.totalorder %s17, 1
    %p187 = por %p185, %p186
    %p188 = scmp.ne.s32.totalorder %s177, %s178
    %p189 = scmp.eq.s32.totalorder %s17, 0
    %p190 = por %p188, %p189
    %p191 = scmp.ne.s32.totalorder %s177, %s178
    %p192 = scmp.eq.s32.totalorder %s18, 1
    %p193 = por %p191, %p192
    %p195 = scmp.ne.s32.totalorder %s178, %s194
    %p196 = scmp.eq.s32.totalorder %s18, 0
    %p197 = por %p195, %p196
    %p198 = scmp.le.s32.totalorder 1, %s12
    %p199 = scmp.lt.s32.totalorder %s12, 3
    %p200 = pnand %p198, %p199
    %p201 = pneg %p200
    // Predicated region
    $region9: #{_forward_impl.1} parent=5 // pred_check
      _
    $region10: #{_forward_impl.1} parent=5 // pred_check_branch
      %203 = sbr.rel (%p200) target = $region12
    $region11: #{_forward_impl.1} parent=5 // pred_region
      %s204 = ssub.s32 %s12, 1
      // Predicated region
      $region13: #{_forward_impl.1} parent=11 // pred_check
        %p205 = pneg %p78
      $region14: #{_forward_impl.1} parent=11 // pred_check_branch
        %207 = sbr.rel (%p205) target = $region16
      $region15: #{_forward_impl.1} parent=11 // pred_region
        %p208 = scmp.lt.s32.totalorder %s22, 0
        %s209 = scalar_select %p208, %s22, 0
        %s210 = smul.addr %s209, 8
        %s211 = scalar_lea.vmem %s1, %s210
      $region16: #{_forward_impl.1} parent=11 // pred_fallthru
        _
      // Predicated region
      $region17: #{_forward_impl.1} parent=11 // pred_check
        %p212 = pneg %p99
      $region18: #{_forward_impl.1} parent=11 // pred_check_branch
        %214 = sbr.rel (%p212) target = $region20
      $region19: #{_forward_impl.1} parent=11 // pred_region
        _
      $region20: #{_forward_impl.1} parent=11 // pred_fallthru
        _
      // Predicated region
      $region21: #{_forward_impl.1} parent=11 // pred_check
        %p215 = pneg %p120
      $region22: #{_forward_impl.1} parent=11 // pred_check_branch
        %217 = sbr.rel (%p215) target = $region24
      $region23: #{_forward_impl.1} parent=11 // pred_region
        _
      $region24: #{_forward_impl.1} parent=11 // pred_fallthru
        _
      // Predicated region
      $region25: #{_forward_impl.1} parent=11 // pred_check
        %p218 = pneg %p141
      $region26: #{_forward_impl.1} parent=11 // pred_check_branch
        %220 = sbr.rel (%p218) target = $region28
      $region27: #{_forward_impl.1} parent=11 // pred_region
        _
      $region28: #{_forward_impl.1} parent=11 // pred_fallthru
        _
      // Predicated region
      $region29: #{_forward_impl.1} parent=11 // pred_check
        %p221 = pneg %p162
      $region30: #{_forward_impl.1} parent=11 // pred_check_branch
        %223 = sbr.rel (%p221) target = $region32
      $region31: #{_forward_impl.1} parent=11 // pred_region
        _
      $region32: #{_forward_impl.1} parent=11 // pred_fallthru
        _
    $region12: #{_forward_impl.1} parent=5 // pred_fallthru
      _
    %p224 = scmp.lt.s32.totalorder %s12, 2
    // Predicated region
    $region33: #{_forward_impl.1} parent=5 // pred_check
      %p225 = pneg %p224
    $region34: #{_forward_impl.1} parent=5 // pred_check_branch
      %227 = sbr.rel (%p225) target = $region36
    $region35: #{_forward_impl.1} parent=5 // pred_region
      // Predicated region
      $region37: #{_forward_impl.1} parent=35 // pred_check
        %p228 = pneg %p46
      $region38: #{_forward_impl.1} parent=35 // pred_check_branch
        %230 = sbr.rel (%p228) target = $region40
      $region39: #{_forward_impl.1} parent=35 // pred_region
        %p231 = scmp.lt.s32.totalorder %s19, 1
        %s232 = scalar_select %p231, %s19, 1
        %p233 = scmp.lt.s32.totalorder %s20, 0
        %s234 = scalar_select %p233, %s20, 0
        %s235 = smul.addr %s232, 2
        %s236 = sadd.s32 %s234, %s235
        %s237 = smul.addr %s236, 8
        %s238 = scalar_lea.vmem %s0, %s237
      $region40: #{_forward_impl.1} parent=35 // pred_fallthru
        _
    $region36: #{_forward_impl.1} parent=5 // pred_fallthru
      _
    %p239 = scmp.le.s32.totalorder 1, %s12
    %p240 = scmp.lt.s32.totalorder %s12, 3
    %p241 = pnand %p239, %p240
    %p242 = pneg %p241
    // Predicated region
    $region41: #{_forward_impl.1} parent=5 // pred_check
      _
    $region42: #{_forward_impl.1} parent=5 // pred_check_branch
      %244 = sbr.rel (%p241) target = $region44
    $region43: #{_forward_impl.1} parent=5 // pred_region
      %s245 = ssub.s32 %s12, 1
      %p246 = scmp.lt.s32.totalorder %s21, 1
      %s247 = scalar_select %p246, %s21, 1
      %p248 = scmp.lt.s32.totalorder %s22, 0
      %s249 = scalar_select %p248, %s22, 0
      %s250 = smul.addr %s247, 2
      %s251 = sadd.s32 %s249, %s250
      %s252 = smul.addr %s251, 8
      %s253 = scalar_lea.vmem %s0, %s252
      %p254 = pneg %p52
      %p255 = pneg %p49
      %p256 = scmp.lt.s32.totalorder %s22, 0
      %s257 = scalar_select %p256, %s22, 0
      %s258 = smul.addr %s257, 8
      %s259 = scalar_lea.vmem %s1, %s258
      %p260 = pneg %p78
      %p261 = pneg %p75
      %p262 = pneg %p99
      %p263 = pneg %p96
      %p264 = pneg %p120
      %p265 = pneg %p117
      %p266 = pneg %p141
      %p267 = pneg %p138
      %p268 = pneg %p162
      %p269 = pneg %p159
      %p270 = pneg %p190
      %p271 = pneg %p187
      %p272 = scmp.lt.s32.totalorder %s21, 1
      %s273 = scalar_select %p272, %s21, 1
      %p274 = scmp.lt.s32.totalorder %s22, 0
      %s275 = scalar_select %p274, %s22, 0
      %s276 = smul.addr %s273, 2
      %s277 = sadd.s32 %s275, %s276
      %s278 = smul.addr %s277, 8
      %s279 = scalar_lea.vmem %s6, %s278
      %p280 = scmp.lt.s32.totalorder %s21, 1
      %s281 = scalar_select %p280, %s21, 1
      %p282 = scmp.lt.s32.totalorder %s22, 0
      %s283 = scalar_select %p282, %s22, 0
      %s284 = smul.addr %s281, 2
      %s285 = sadd.s32 %s283, %s284
      %s286 = smul.addr %s285, 8
      %s287 = scalar_lea.vmem %s0, %s286
      %p288 = scmp.lt.s32.totalorder %s22, 0
      %s289 = scalar_select %p288, %s22, 0
      %s290 = smul.addr %s289, 8
      %s291 = scalar_lea.vmem %s1, %s290
      %p292 = scmp.lt.s32.totalorder %s21, 1
      %s293 = scalar_select %p292, %s21, 1
      %p294 = scmp.lt.s32.totalorder %s22, 0
      %s295 = scalar_select %p294, %s22, 0
      %s296 = smul.addr %s293, 2
      %s297 = sadd.s32 %s295, %s296
      %s298 = smul.addr %s297, 8
      %s299 = scalar_lea.vmem %s6, %s298
      %v300 = vld [vmem:[%s291] sm:$0xff]
      %v301 = vld [vmem:[%s291 + $0x8] sm:$0xff]
      %v302 = vld [vmem:[%s2] sm:$0xff]
      %v303 = vld [vmem:[%s2 + $0x8] sm:$0xff]
      %v304 = vld [vmem:[%s2 + $0x10] sm:$0xff]
      %v305 = vld [vmem:[%s2 + $0x18] sm:$0xff]
      %v306 = vld [vmem:[%s3] sm:$0xff]
      %v307 = vld [vmem:[%s3 + $0x8] sm:$0xff]
      %v308 = vld [vmem:[%s3 + $0x10] sm:$0xff]
      %v309 = vld [vmem:[%s3 + $0x18] sm:$0xff]
      %v310 = vld [vmem:[%s4] sm:$0xff]
      %v311 = vld [vmem:[%s4 + $0x8] sm:$0x3]
      %v312 = vld [vmem:[%s5] sm:$0xff]
      %v313 = vld [vmem:[%s5 + $0x8] sm:$0x3]
      %v314 = vlaneseq
      %v315 = vshrl.u32 %v314, 7
      %v316 = vadd.s32 %v315, 8
      %v317 = vld [vmem:[%s287] sm:$0xff]
      %v318 = vld [vmem:[%s287 + $0x8] sm:$0xff]
      %vm319 = vcmask 31744
      %v320 = vsel %vm319, %v317, 0.0
      %v321 = vsel %vm319, %v318, 0.0
      %v322 = vadd.f32 %v320, %v321
      %v323 = vrot.slane %v322, 4
      %v324 = vadd.f32 %v322, %v323
      %v325 = vrot.slane %v324, 2
      %v326 = vadd.f32 %v324, %v325
      %v327 = vrot.slane %v326, 1
      %v328 = vadd.f32 %v326, %v327
      %v329 = vrcp.pop 16.0
      %v330 = vmul.f32 %v328, %v329
      %v331 = vsub.f32 %v317, %v330
      %v332 = vsub.f32 %v318, %v330
      %v333 = vmul.f32 %v331, %v331
      %v334 = vmul.f32 %v332, %v332
      %v335 = vsel %vm319, %v333, 0.0
      %v336 = vsel %vm319, %v334, 0.0
      %v337 = vadd.f32 %v335, %v336
      %v338 = vrot.slane %v337, 4
      %v339 = vadd.f32 %v337, %v338
      %v340 = vrot.slane %v339, 2
      %v341 = vadd.f32 %v339, %v340
      %v342 = vrot.slane %v341, 1
      %v343 = vadd.f32 %v341, %v342
      %v344 = vmul.f32 %v343, %v329
      %v345 = vadd.f32 %v344, 1e-05
      %v346 = vrsqrt.pop %v345
      %v347 = vmul.f32 %v345, %v346
      %v348 = vmul.f32 %v346, %v300
      %v349 = vlaneseq
      %v350 = vshrl.u32 %v349, 7
      %v351 = vsub.s32 0, %v350
      %v352 = vrot.slane %v348, %v351
      %v353 = vmul.f32 %v331, %v352
      %v354 = vmul.f32 %v332, %v352
      %v355 = vlaneseq
      %v356 = vshrl.u32 %v355, 7
      %v357 = vsub.s32 1, %v356
      %v358 = vrot.slane %v300, %v357
      %v359 = vadd.f32 %v353, %v358
      %v360 = vadd.f32 %v354, %v358
      %362 = vset.pattern.permute.xlu0 0
      %363 = vperm.xlu0 %362, %v306
      %v364 = vpop.permute.xlu0 %363
      %367 = vset.pattern.permute.xlu0 0
      %368 = vperm.xlu0 %367, %v307
      %v369 = vpop.permute.xlu0 %368
      %372 = vset.pattern.permute.xlu0 0
      %373 = vperm.xlu0 %372, %v308
      %v374 = vpop.permute.xlu0 %373
      %377 = vset.pattern.permute.xlu0 0
      %378 = vperm.xlu0 %377, %v309
      %v379 = vpop.permute.xlu0 %378
      %vm381 = vcmask 130048
      %v383 = vsel %vm381, %v302, 0
      %v386 = vsel %vm381, %v303, 0
      %v389 = vsel %vm381, %v304, 0
      %v392 = vsel %vm381, %v305, 0
      %394 = vmatprep.subr.mxu0 0.0
      %395 = vmatpush1.msra.mxu0 0.0
      %396 = vmatprep.subr.mxu0 0.0
      %397 = vmatpush1.msra.mxu0 0.0
      %398 = vmatprep.subr.mxu0 0.0
      %399 = vmatpush1.msra.mxu0 0.0
      %400 = vmatprep.subr.mxu0 0.0
      %401 = vmatpush1.msra.mxu0 0.0
      %402 = vmatprep.subr.mxu0 0.0
      %403 = vmatpush1.msra.mxu0 0.0
      %404 = vmatprep.subr.mxu0 0.0
      %405 = vmatpush1.msra.mxu0 0.0
      %406 = vmatprep.subr.mxu0 0.0
      %407 = vmatpush1.msra.mxu0 0.0
      %408 = vmatprep.subr.mxu0 0.0
      %409 = vmatpush1.msra.mxu0 0.0
      %410 = vmatprep.subr.mxu0 0.0
      %411 = vmatpush1.msra.mxu0 0.0
      %412 = vmatprep.subr.mxu0 0.0
      %413 = vmatpush1.msra.mxu0 0.0
      %414 = vmatprep.subr.mxu0 0.0
      %415 = vmatpush1.msra.mxu0 0.0
      %416 = vmatprep.subr.mxu0 0.0
      %417 = vmatpush1.msra.mxu0 0.0
      %418 = vmatprep.subr.mxu0 0.0
      %419 = vmatpush1.msra.mxu0 0.0
      %420 = vmatprep.subr.mxu0 0.0
      %421 = vmatpush1.msra.mxu0 0.0
      %422 = vmatprep.subr.mxu0 0.0
      %423 = vmatpush1.msra.mxu0 %v360
      %424 = vmatprep.subr.mxu0 0.0
      %425 = vmatpush1.msra.mxu0 %v359
      %426 = vmatprep.subr.mxu0 0.0
      %427 = vmatpush2.msra.mxu0 0.0
      %428 = vmatprep.subr.mxu0 0.0
      %429 = vmatpush2.msra.mxu0 0.0
      %430 = vmatprep.subr.mxu0 0.0
      %431 = vmatpush2.msra.mxu0 0.0
      %432 = vmatprep.subr.mxu0 0.0
      %433 = vmatpush2.msra.mxu0 0.0
      %434 = vmatprep.subr.mxu0 0.0
      %435 = vmatpush2.msra.mxu0 0.0
      %436 = vmatprep.subr.mxu0 0.0
      %437 = vmatpush2.msra.mxu0 0.0
      %438 = vmatprep.subr.mxu0 0.0
      %439 = vmatpush2.msra.mxu0 0.0
      %440 = vmatprep.subr.mxu0 0.0
      %441 = vmatpush2.msra.mxu0 0.0
      %442 = vmatprep.subr.mxu0 0.0
      %443 = vmatpush2.msra.mxu0 0.0
      %444 = vmatprep.subr.mxu0 0.0
      %445 = vmatpush2.msra.mxu0 0.0
      %446 = vmatprep.subr.mxu0 0.0
      %447 = vmatpush2.msra.mxu0 0.0
      %448 = vmatprep.subr.mxu0 0.0
      %449 = vmatpush2.msra.mxu0 0.0
      %450 = vmatprep.subr.mxu0 0.0
      %451 = vmatpush2.msra.mxu0 0.0
      %452 = vmatprep.subr.mxu0 0.0
      %453 = vmatpush2.msra.mxu0 0.0
      %454 = vmatprep.subr.mxu0 0.0
      %455 = vmatpush2.msra.mxu0 0.0
      %456 = vmatprep.subr.mxu0 0.0
      %457 = vmatpush2.msra.mxu0 0.0
      %458 = vmatprep.mubr.f32.mxu0 0.0
      %459 = vmatmul.mubr.f32.gmra.mxu0 %v383
      %v460 = vpop.f32.mrf.mxu0
      %v461 = vadd.f32 %v364, %v460
      %v462 = vpop.f32.mrf.mxu0
      %463 = vmatprep.mubr.f32.mxu0 0.0
      %464 = vmatmul.mubr.f32.gmra.mxu0 %v386
      %v465 = vpop.f32.mrf.mxu0
      %v466 = vadd.f32 %v369, %v465
      %v467 = vpop.f32.mrf.mxu0
      %468 = vmatprep.mubr.f32.mxu0 0.0
      %469 = vmatmul.mubr.f32.gmra.mxu0 %v389
      %v470 = vpop.f32.mrf.mxu0
      %v471 = vadd.f32 %v374, %v470
      %v472 = vpop.f32.mrf.mxu0
      %473 = vmatprep.mubr.f32.mxu0 0.0
      %474 = vmatmul.mubr.f32.gmra.mxu0 %v392
      %v475 = vpop.f32.mrf.mxu0
      %v476 = vadd.f32 %v379, %v475
      %v477 = vpop.f32.mrf.mxu0
      %478 = vdwg.mxu0
      %v479 = vmax.f32 %v461, 0.0
      %v480 = vmax.f32 %v466, 0.0
      %v481 = vmax.f32 %v471, 0.0
      %v482 = vmax.f32 %v476, 0.0
      %484 = vset.pattern.permute.xlu0 0
      %485 = vperm.xlu0 %484, %v312
      %v486 = vpop.permute.xlu0 %485
      %489 = vset.pattern.permute.xlu0 0
      %490 = vperm.xlu0 %489, %v313
      %v491 = vpop.permute.xlu0 %490
      %vm493 = vcmask 261120
      %v495 = vsel %vm493, %v310, 0
      %v498 = vsel %vm493, %v311, 0
      %500 = vmatprep.subr.mxu0 0.0
      %501 = vmatpush1.msra.mxu0 0.0
      %502 = vmatprep.subr.mxu0 0.0
      %503 = vmatpush1.msra.mxu0 0.0
      %504 = vmatprep.subr.mxu0 0.0
      %505 = vmatpush1.msra.mxu0 0.0
      %506 = vmatprep.subr.mxu0 0.0
      %507 = vmatpush1.msra.mxu0 0.0
      %508 = vmatprep.subr.mxu0 0.0
      %509 = vmatpush1.msra.mxu0 0.0
      %510 = vmatprep.subr.mxu0 0.0
      %511 = vmatpush1.msra.mxu0 0.0
      %512 = vmatprep.subr.mxu0 0.0
      %513 = vmatpush1.msra.mxu0 0.0
      %514 = vmatprep.subr.mxu0 0.0
      %515 = vmatpush1.msra.mxu0 0.0
      %516 = vmatprep.subr.mxu0 0.0
      %517 = vmatpush1.msra.mxu0 0.0
      %518 = vmatprep.subr.mxu0 0.0
      %519 = vmatpush1.msra.mxu0 0.0
      %520 = vmatprep.subr.mxu0 0.0
      %521 = vmatpush1.msra.mxu0 0.0
      %522 = vmatprep.subr.mxu0 0.0
      %523 = vmatpush1.msra.mxu0 0.0
      %524 = vmatprep.subr.mxu0 0.0
      %525 = vmatpush1.msra.mxu0 %v482
      %526 = vmatprep.subr.mxu0 0.0
      %527 = vmatpush1.msra.mxu0 %v481
      %528 = vmatprep.subr.mxu0 0.0
      %529 = vmatpush1.msra.mxu0 %v480
      %530 = vmatprep.subr.mxu0 0.0
      %531 = vmatpush1.msra.mxu0 %v479
      %532 = vmatprep.subr.mxu0 0.0
      %533 = vmatpush2.msra.mxu0 0.0
      %534 = vmatprep.subr.mxu0 0.0
      %535 = vmatpush2.msra.mxu0 0.0
      %536 = vmatprep.subr.mxu0 0.0
      %537 = vmatpush2.msra.mxu0 0.0
      %538 = vmatprep.subr.mxu0 0.0
      %539 = vmatpush2.msra.mxu0 0.0
      %540 = vmatprep.subr.mxu0 0.0
      %541 = vmatpush2.msra.mxu0 0.0
      %542 = vmatprep.subr.mxu0 0.0
      %543 = vmatpush2.msra.mxu0 0.0
      %544 = vmatprep.subr.mxu0 0.0
      %545 = vmatpush2.msra.mxu0 0.0
      %546 = vmatprep.subr.mxu0 0.0
      %547 = vmatpush2.msra.mxu0 0.0
      %548 = vmatprep.subr.mxu0 0.0
      %549 = vmatpush2.msra.mxu0 0.0
      %550 = vmatprep.subr.mxu0 0.0
      %551 = vmatpush2.msra.mxu0 0.0
      %552 = vmatprep.subr.mxu0 0.0
      %553 = vmatpush2.msra.mxu0 0.0
      %554 = vmatprep.subr.mxu0 0.0
      %555 = vmatpush2.msra.mxu0 0.0
      %556 = vmatprep.subr.mxu0 0.0
      %557 = vmatpush2.msra.mxu0 0.0
      %558 = vmatprep.subr.mxu0 0.0
      %559 = vmatpush2.msra.mxu0 0.0
      %560 = vmatprep.subr.mxu0 0.0
      %561 = vmatpush2.msra.mxu0 0.0
      %562 = vmatprep.subr.mxu0 0.0
      %563 = vmatpush2.msra.mxu0 0.0
      %564 = vmatprep.mubr.f32.mxu0 0.0
      %565 = vmatmul.mubr.f32.gmra.mxu0 %v495
      %v566 = vpop.f32.mrf.mxu0
      %v567 = vadd.f32 %v486, %v566
      %v568 = vpop.f32.mrf.mxu0
      %569 = vmatprep.mubr.f32.mxu0 0.0
      %570 = vmatmul.mubr.f32.gmra.mxu0 %v498
      %v571 = vpop.f32.mrf.mxu0
      %v572 = vadd.f32 %v491, %v571
      %v573 = vpop.f32.mrf.mxu0
      %574 = vdwg.mxu0
      %v575 = vmul.f32 %v347, %v300
      %v577 = vrot.slane %v300, 3
      %v579 = vadd.f32 %v572, %v577
      %v581 = vrot.slane %v579, 6
      %v583 = vmul.f32 %v575, %v581
      %v584 = vmul.f32 %v330, %v300
      %v586 = vrot.slane %v584, 3
      %v588 = vadd.f32 %v583, %v586
      %v589 = vrot.slane %v300, 5
      %v591 = vadd.f32 %v588, %v589
      %v592 = vrot.slane %v579, 7
      %v594 = vmul.f32 %v575, %v592
      %v595 = vrot.slane %v584, 4
      %v597 = vadd.f32 %v594, %v595
      %v599 = vrot.slane %v301, 6
      %v601 = vadd.f32 %v597, %v599
      %vm602 = vcmp.eq.s32.totalorder %v315, 8
      %vm603 = vcmp.eq.s32.totalorder %v316, 8
      %v604 = vlaneseq
      %v605 = vshrl.u32 %v604, 7
      %v606 = vsub.s32 2, %v605
      %v607 = vrot.slane %v591, %v606
      %v608 = vsel %vm602, %v607, %v567
      %v609 = vsel %vm603, %v607, %v572
      %vm610 = vcmp.eq.s32.totalorder %v315, 9
      %vm611 = vcmp.eq.s32.totalorder %v316, 9
      %v612 = vlaneseq
      %v613 = vshrl.u32 %v612, 7
      %v614 = vsub.s32 2, %v613
      %v615 = vrot.slane %v601, %v614
      %v616 = vsel %vm610, %v615, %v608
      %v617 = vsel %vm611, %v615, %v609
      %618 = vst.msk [vmem:[%s299] sm:$0xff] %vm319, %v616
      %vm619 = vcmask 25600
      %620 = vst.msk [vmem:[%s299 + $0x8] sm:$0x3] %vm619, %v617
      %p621 = scmp.lt.s32.totalorder %s21, 1
      %s622 = scalar_select %p621, %s21, 1
      %p623 = scmp.lt.s32.totalorder %s22, 0
      %s624 = scalar_select %p623, %s22, 0
      %s625 = smul.addr %s622, 2
      %s626 = sadd.s32 %s624, %s625
      %s627 = smul.addr %s626, 8
      %s628 = scalar_lea.vmem %s6, %s627
      // Predicated region
      $region45: #{_forward_impl.1} parent=43 // pred_check
        %p629 = pneg %p187
      $region46: #{_forward_impl.1} parent=43 // pred_check_branch
        %631 = sbr.rel (%p629) target = $region48
      $region47: #{_forward_impl.1} parent=43 // pred_region
        _
      $region48: #{_forward_impl.1} parent=43 // pred_fallthru
        _
    $region44: #{_forward_impl.1} parent=5 // pred_fallthru
      _
    %p632 = scmp.le.s32.totalorder 2, %s12
    // Predicated region
    $region49: #{_forward_impl.1} parent=5 // pred_check
      %p633 = pneg %p632
    $region50: #{_forward_impl.1} parent=5 // pred_check_branch
      %635 = sbr.rel (%p633) target = $region52
    $region51: #{_forward_impl.1} parent=5 // pred_region
      %s636 = ssub.s32 %s12, 2
      // Predicated region
      $region53: #{_forward_impl.1} parent=51 // pred_check
        %p637 = pneg %p193
      $region54: #{_forward_impl.1} parent=51 // pred_check_branch
        %639 = sbr.rel (%p637) target = $region56
      $region55: #{_forward_impl.1} parent=51 // pred_region
        %p640 = scmp.lt.s32.totalorder %s23, 1
        %s641 = scalar_select %p640, %s23, 1
        %p642 = scmp.lt.s32.totalorder %s24, 0
        %s643 = scalar_select %p642, %s24, 0
        %s644 = smul.addr %s641, 2
        %s645 = sadd.s32 %s643, %s644
        %s646 = smul.addr %s645, 8
        %s647 = scalar_lea.vmem %s6, %s646
      $region56: #{_forward_impl.1} parent=51 // pred_fallthru
        _
    $region52: #{_forward_impl.1} parent=5 // pred_fallthru
      _
  $region6: #{_forward_impl.1} parent=0 // loop_footer
    %s16 = sadd.s32 1, %s12
  $region7: #{_forward_impl.1} parent=0 // loop_footer_branch
    %11 = sbr.rel target = $region3
  $region8: #{_forward_impl.1} parent=0 // loop_exit
    _

</llo_original>
